<compile_context>
chip_gen: v7x
topology: tpu7x:2x2x1
jax: 0.10.0
libtpu: 0.0.40
codegen_flags: <defaults>
</compile_context>

<pallas_src>
import jax
import jax.numpy as jnp
from jax.experimental import pallas as pl
from jax.experimental.pallas import tpu as pltpu


def gcn_kernel(feats_ref, adj_ref, wt_ref, b_ref, out_ref, acc_ref):
    """Grid = (batch, row-tile, K-tile); K (neighbour axis) is the reduction.

    feats_ref: (TK, 1 + c_in) bf16   -- column 0 is all-ones (degree via MXU)
    adj_ref:   (TM, TK)       int8/bf16, entries 0/1
    wt_ref:    (1 + c_in, c_out_p)   -- row 0 is zero (drops the degree column)
    b_ref:     (1, c_out_p)
    out_ref:   (TM, c_out_p)
    acc_ref:   (TM, 1 + c_in) f32
    """
    k = pl.program_id(2)

    @pl.when(k == 0)
    def _init():
        acc_ref[...] = jnp.zeros_like(acc_ref)

    # Upcast the narrow adjacency stream to bf16 on the VPU; both operands are
    # bf16 -> native single-pass MXU matmul, f32 accumulation.
    adj = adj_ref[...].astype(jnp.bfloat16)                  # (TM, TK)
    x = feats_ref[...]                                       # (TK, 1 + c_in)
    acc_ref[...] += jnp.dot(adj, x, preferred_element_type=jnp.float32)

    @pl.when(k == pl.num_programs(2) - 1)
    def _finalize():
        acc = acc_ref[...]                                   # (TM, 1 + c_in) f32
        deg = acc[:, 0:1]                                    # row degree (exact)
        norm = acc * pl.reciprocal(deg, approx=False)        # (TM, 1 + c_in)
        # wt row 0 is zero, so the normalized degree column contributes 0.
        h = jnp.dot(norm, wt_ref[...], preferred_element_type=jnp.float32)
        out_ref[...] = (h + b_ref[...]).astype(out_ref.dtype)


def _round_up(x, m):
    return ((x + m - 1) // m) * m


def _pick_tile(n, target, align):
    """Largest divisor of n that is <= target and a multiple of `align`.
    n is always a multiple of `align` here, so this always succeeds."""
    if n <= target:
        return n
    t = (target // align) * align
    while t >= align:
        if n % t == 0:
            return t
        t -= align
    return n


def gcn_layer(node_feats, adj_matrix, weight, bias, *,
              tm=1024, tk=2048, assume_binary_adj=True):
    """node_feats: (B, N, c_in), adj_matrix: (B, N, N),
       weight: (c_out, c_in), bias: (c_out,)  ->  (B, N, c_out)"""
    B, N, c_in = node_feats.shape
    c_out = weight.shape[0]
    out_dtype = node_feats.dtype

    # ---- wrapper-side layout / dtype preparation ---------------------------
    N_pad = _round_up(N, 128)        # lane-aligned node count (zero pad is inert)
    c_out_p = _round_up(c_out, 128)  # lane-dense, unmasked output stores
    c_in_e = c_in + 1                # +1 ones column carrying the degree

    # Features: prepend ones column, cast to bf16 (halves feats HBM bytes),
    # pad the node axis.
    feats_e = jnp.concatenate(
        [jnp.ones((B, N, 1), jnp.bfloat16), node_feats.astype(jnp.bfloat16)],
        axis=-1)
    feats_e = jnp.pad(feats_e, ((0, 0), (0, N_pad - N), (0, 0)))

    # Adjacency: the N^2 stream dominates HBM traffic.  0/1 entries -> int8 is
    # a lossless 4x narrowing vs f32 (bf16 fallback for weighted graphs).
    adj_p = jnp.pad(adj_matrix, ((0, 0), (0, N_pad - N), (0, N_pad - N)))
    adj_stream = adj_p.astype(jnp.int8 if assume_binary_adj else jnp.bfloat16)

    # Weight: pre-transposed, zero row 0 (kills the degree column), padded to
    # 128 output lanes.  Bias likewise.
    wt = jnp.zeros((c_in_e, c_out_p), weight.dtype).at[1:, :c_out].set(weight.T)
    b2 = jnp.zeros((1, c_out_p), bias.dtype).at[:, :c_out].set(bias)

    TM = _pick_tile(N_pad, tm, 128)   # output-row tile
    TK = _pick_tile(N_pad, tk, 128)   # neighbour / reduction tile
    grid = (B, N_pad // TM, N_pad // TK)

    cost = pl.CostEstimate(
        flops=2 * B * (N_pad * N_pad * c_in_e + N_pad * c_in_e * c_out_p),
        transcendentals=0,
        bytes_accessed=(B * N_pad * N_pad * adj_stream.dtype.itemsize
                        + B * N_pad * c_in_e * 2
                        + c_in_e * c_out_p * jnp.dtype(weight.dtype).itemsize
                        + B * N_pad * c_out_p * jnp.dtype(out_dtype).itemsize))

    out_padded = pl.pallas_call(
        gcn_kernel,
        out_shape=jax.ShapeDtypeStruct((B, N_pad, c_out_p), out_dtype),
        grid_spec=pltpu.PrefetchScalarGridSpec(
            num_scalar_prefetch=0,
            grid=grid,
            in_specs=[
                # NOTE: feats K-blocks are re-streamed per row tile; for small
                # c_in (<< TM) this is a few % of the adj stream.  For very
                # wide features keep a full (N_pad, c_in_e) block resident.
                pl.BlockSpec((pl.Squeezed(), TK, c_in_e),
                             lambda b, m, k: (b, k, 0)),
                pl.BlockSpec((pl.Squeezed(), TM, TK),
                             lambda b, m, k: (b, m, k)),
                pl.BlockSpec((c_in_e, c_out_p), lambda b, m, k: (0, 0)),
                pl.BlockSpec((1, c_out_p), lambda b, m, k: (0, 0)),
            ],
            out_specs=pl.BlockSpec((pl.Squeezed(), TM, c_out_p),
                                   lambda b, m, k: (b, m, 0)),
            scratch_shapes=[
                pltpu.VMEM((TM, c_in_e), jnp.float32),  # adj @ [1|x] accumulator
            ],
        ),
        compiler_params=pltpu.CompilerParams(
            dimension_semantics=("parallel", "parallel", "arbitrary"),
            vmem_limit_bytes=48 * 1024 * 1024),
        cost_estimate=cost,
    )(feats_e, adj_stream, wt, b2)

    return out_padded[:, :N, :c_out]


if __name__ == "__main__":
    B, N, C_IN, C_OUT = 2, 8, 16, 32

    key = jax.random.PRNGKey(0)
    k1, k2, k3, k4 = jax.random.split(key, 4)

    # Deterministic parameter init (PyTorch Linear-style uniform bound)
    bound = 1.0 / (C_IN ** 0.5)
    weight = jax.random.uniform(k1, (C_OUT, C_IN), jnp.float32, -bound, bound)
    bias = jax.random.uniform(k2, (C_OUT,), jnp.float32, -bound, bound)

    node_feats = jax.random.normal(k3, (B, N, C_IN), jnp.float32)
    # Random binary adjacency with self-loops (row-sum >= 1, no divide-by-zero)
    adj = (jax.random.uniform(k4, (B, N, N)) > 0.5).astype(jnp.float32)
    adj = jnp.maximum(adj, jnp.eye(N, dtype=jnp.float32)[None])

    out = gcn_layer(node_feats, adj, weight, bias)
    out = jax.block_until_ready(out)

    # Pure-JAX reference (original op order: project, aggregate, normalize)
    h_ref = node_feats @ weight.T + bias
    ref = jnp.einsum("bij,bjc->bic", adj, h_ref) / adj.sum(-1, keepdims=True)
    assert out.shape == ref.shape
    # Features are streamed in bf16 (f32 accumulation) -> ~1e-3 abs error here.
    assert jnp.allclose(out, ref, atol=1e-2, rtol=1e-2), "mismatch vs reference"

    print("KERNEL_OK")
</pallas_src>

<mosaic_0001>
module attributes {stable_mosaic.version = 11 : i64} {
  func.func @gcn_kernel(%arg0: i32, %arg1: i32, %arg2: i32, %arg3: memref<1x128x17xbf16, #tpu.memory_space<vmem>>, %arg4: memref<1x128x128xi8, #tpu.memory_space<vmem>>, %arg5: memref<17x128xf32, #tpu.memory_space<vmem>>, %arg6: memref<1x128xf32, #tpu.memory_space<vmem>>, %arg7: memref<1x128x128xf32, #tpu.memory_space<vmem>>, %arg8: memref<128x17xf32, #tpu.memory_space<vmem>>) attributes {dimension_semantics = [#tpu.dimension_semantics<parallel>, #tpu.dimension_semantics<parallel>, #tpu.dimension_semantics<arbitrary>], iteration_bounds = array<i64: 2, 1, 1>, scalar_prefetch = 0 : i64, scratch_operands = 1 : i64, tpu.core_type = #tpu.core_type<tc>, window_params = [{transform_indices = @transform_0, window_bounds = array<i64: 1, 128, 17>}, {transform_indices = @transform_1, window_bounds = array<i64: 1, 128, 128>}, {pipeline_mode = #tpu.pipeline_mode<synchronous>, transform_indices = @transform_2, window_bounds = array<i64: 17, 128>}, {pipeline_mode = #tpu.pipeline_mode<synchronous>, transform_indices = @transform_3, window_bounds = array<i64: 1, 128>}, {transform_indices = @transform_4, window_bounds = array<i64: 1, 128, 128>}]} {
    %c0_i32 = arith.constant 0 : i32
    %0 = arith.cmpi eq, %arg2, %c0_i32 : i32
    %1 = arith.extui %0 : i1 to i32
    %c0_i32_0 = arith.constant 0 : i32
    %2 = arith.cmpi ne, %1, %c0_i32_0 : i32
    scf.if %2 {
      %cst_12 = arith.constant 0.000000e+00 : f32
      %15 = vector.broadcast %cst_12 : f32 to vector<128x17xf32>
      %c0_13 = arith.constant 0 : index
      %c0_14 = arith.constant 0 : index
      %16 = vector.load %arg8[%c0_13, %c0_14] : memref<128x17xf32, #tpu.memory_space<vmem>>, vector<128x17xf32>
      tpu.vector_store %arg8[%c0_13, %c0_14], %15 {strides = array<i32>} : memref<128x17xf32, #tpu.memory_space<vmem>>, vector<128x17xf32>,
    } else {
    }
    %c0 = arith.constant 0 : index
    %c0_1 = arith.constant 0 : index
    %c0_2 = arith.constant 0 : index
    %3 = vector.load %arg4[%c0, %c0_1, %c0_2] : memref<1x128x128xi8, #tpu.memory_space<vmem>>, vector<1x128x128xi8>
    %4 = vector.shape_cast %3 : vector<1x128x128xi8> to vector<128x128xi8>
    %5 = arith.sitofp %4 : vector<128x128xi8> to vector<128x128xbf16>
    %c0_3 = arith.constant 0 : index
    %c0_4 = arith.constant 0 : index
    %c0_5 = arith.constant 0 : index
    %6 = vector.load %arg3[%c0_3, %c0_4, %c0_5] : memref<1x128x17xbf16, #tpu.memory_space<vmem>>, vector<1x128x17xbf16>
    %7 = vector.shape_cast %6 : vector<1x128x17xbf16> to vector<128x17xbf16>
    %c0_6 = arith.constant 0 : index
    %c0_7 = arith.constant 0 : index
    %8 = vector.load %arg8[%c0_6, %c0_7] : memref<128x17xf32, #tpu.memory_space<vmem>>, vector<128x17xf32>
    %cst = arith.constant dense<0.000000e+00> : vector<128x17xf32>
    %9 = tpu.matmul %5, %7, %cst {dimension_numbers = #tpu.dot_dimension_numbers<[1], [0], [0], [1], [0, 0, 1, 1], [], []>} : vector<128x128xbf16>, vector<128x17xbf16>, vector<128x17xf32> -> vector<128x17xf32>
    %10 = arith.addf %8, %9 : vector<128x17xf32>
    %c0_8 = arith.constant 0 : index
    %c0_9 = arith.constant 0 : index
    %11 = vector.load %arg8[%c0_8, %c0_9] : memref<128x17xf32, #tpu.memory_space<vmem>>, vector<128x17xf32>
    tpu.vector_store %arg8[%c0_8, %c0_9], %10 {strides = array<i32>} : memref<128x17xf32, #tpu.memory_space<vmem>>, vector<128x17xf32>,
    %c0_i32_10 = arith.constant 0 : i32
    %12 = arith.cmpi eq, %arg2, %c0_i32_10 : i32
    %13 = arith.extui %12 : i1 to i32
    %c0_i32_11 = arith.constant 0 : i32
    %14 = arith.cmpi ne, %13, %c0_i32_11 : i32
    scf.if %14 {
      %c0_12 = arith.constant 0 : index
      %c0_13 = arith.constant 0 : index
      %15 = vector.load %arg8[%c0_12, %c0_13] : memref<128x17xf32, #tpu.memory_space<vmem>>, vector<128x17xf32>
      %16 = vector.extract_strided_slice %15 {offsets = [0, 0], sizes = [128, 1], strides = [1, 1]} : vector<128x17xf32> to vector<128x1xf32>
      %17 = tpu.reciprocal %16 : vector<128x1xf32> -> vector<128x1xf32>
      %18 = vector.broadcast %17 : vector<128x1xf32> to vector<128x17xf32>
      %19 = arith.mulf %15, %18 : vector<128x17xf32>
      %c0_14 = arith.constant 0 : index
      %c0_15 = arith.constant 0 : index
      %20 = vector.load %arg5[%c0_14, %c0_15] : memref<17x128xf32, #tpu.memory_space<vmem>>, vector<17x128xf32>
      %cst_16 = arith.constant dense<0.000000e+00> : vector<128x128xf32>
      %21 = tpu.matmul %19, %20, %cst_16 {dimension_numbers = #tpu.dot_dimension_numbers<[1], [0], [0], [1], [0, 0, 1, 1], [], []>} : vector<128x17xf32>, vector<17x128xf32>, vector<128x128xf32> -> vector<128x128xf32>
      %c0_17 = arith.constant 0 : index
      %c0_18 = arith.constant 0 : index
      %22 = vector.load %arg6[%c0_17, %c0_18] : memref<1x128xf32, #tpu.memory_space<vmem>>, vector<1x128xf32>
      %23 = vector.broadcast %22 : vector<1x128xf32> to vector<128x128xf32>
      %24 = arith.addf %21, %23 : vector<128x128xf32>
      %c0_19 = arith.constant 0 : index
      %c0_20 = arith.constant 0 : index
      %c0_21 = arith.constant 0 : index
      %25 = vector.load %arg7[%c0_19, %c0_20, %c0_21] : memref<1x128x128xf32, #tpu.memory_space<vmem>>, vector<1x128x128xf32>
      %26 = vector.shape_cast %25 : vector<1x128x128xf32> to vector<128x128xf32>
      %27 = vector.shape_cast %24 : vector<128x128xf32> to vector<1x128x128xf32>
      tpu.vector_store %arg7[%c0_19, %c0_20, %c0_21], %27 {strides = array<i32>} : memref<1x128x128xf32, #tpu.memory_space<vmem>>, vector<1x128x128xf32>,
    } else {
    }
    return
  }
  func.func @transform_0(%arg0: i32, %arg1: i32, %arg2: i32) -> (i32, i32, i32) {
    %c0_i32 = arith.constant 0 : i32
    %c0_i32_0 = arith.constant 0 : i32
    return %arg0, %arg2, %c0_i32 : i32, i32, i32
  }
  func.func @transform_1(%arg0: i32, %arg1: i32, %arg2: i32) -> (i32, i32, i32) {
    %c0_i32 = arith.constant 0 : i32
    return %arg0, %arg1, %arg2 : i32, i32, i32
  }
  func.func @transform_2(%arg0: i32, %arg1: i32, %arg2: i32) -> (i32, i32) {
    %c0_i32 = arith.constant 0 : i32
    %c0_i32_0 = arith.constant 0 : i32
    %c0_i32_1 = arith.constant 0 : i32
    return %c0_i32, %c0_i32_0 : i32, i32
  }
  func.func @transform_3(%arg0: i32, %arg1: i32, %arg2: i32) -> (i32, i32) {
    %c0_i32 = arith.constant 0 : i32
    %c0_i32_0 = arith.constant 0 : i32
    %c0_i32_1 = arith.constant 0 : i32
    return %c0_i32, %c0_i32_0 : i32, i32
  }
  func.func @transform_4(%arg0: i32, %arg1: i32, %arg2: i32) -> (i32, i32, i32) {
    %c0_i32 = arith.constant 0 : i32
    %c0_i32_0 = arith.constant 0 : i32
    return %arg0, %arg1, %c0_i32 : i32, i32, i32
  }
}

</mosaic_0001>

<llo_original>
// kernel: tpu_custom_call.1
$region0: #{tpu_custom_call.1}
  #allocation0 [shape = 'u32[]', space=smem, size = 0x4, offset = 0x4, fixed_abs, tag = 'smem constant byte address 0x4 - core index']
  #allocation1 [shape = 'u32[144,128]{1,0:T(1,128)}', space=vmem, size = 0x12000, scoped, tag = 'internal scratch']
  #allocation2 [shape = 'f32[128,17]{1,0:T(8,128)}', space=vmem, size = 0x10000, scoped, tag = 'scratch operand']
  %s0 = inlined_call_operand.vmem [shape: bf16[2,128,17], index: 0, kind: input, shape index: {}]
  %s1 = inlined_call_operand.vmem [shape: s8[2,128,128], index: 1, kind: input, shape index: {}]
  %s2 = inlined_call_operand.vmem [shape: f32[17,128], index: 2, kind: input, shape index: {}]
  %s3 = inlined_call_operand.vmem [shape: f32[1,128], index: 3, kind: input, shape index: {}]
  %s4 = inlined_call_operand.hbm [shape: f32[2,128,128], index: 4, kind: output, shape index: {}]
  %s5 = sld [smem:[#allocation0]]
  $region57: #{tpu_custom_call.1} parent=0
    _
  %s7 = ssub.s32 1, %s5
  %s8 = scalar_select 0, %s7, %s5
  $region1: #{tpu_custom_call.1} parent=0
    #allocation3 [shape = 'u8[131072]{0}', space=vmem, size = 0x20000, scoped, tag = 'output window, operand 0']
    #allocation4 [shape = 's32[2]{0}', space=sflag, size = 0x8, scoped, tag = 'scoped memory for tpu_custom_call.1']
    %9 = vsyncpa [#allocation4], 0
    %s10 = scalar_lea.sflag [#allocation4], 1
    %11 = vsyncpa %s10, 0
    loop: start=0, step=1, limit=4
    $region2: #{tpu_custom_call.1} parent=1 // loop_pre_header
      _
    $region3: #{tpu_custom_call.1} parent=1 // loop_header
      %s13 = sphi 0, %s17
      %p14 = scmp.ge.s32.totalorder %s13, 4
      %s20 = sphi 0, %s39
      %s21 = sphi 0, %s35
      %s22 = sphi 0, %s31
      %s23 = sphi 0, %s20
      %s24 = sphi 0, %s21
      %s25 = sphi 0, %s22
      %s26 = sphi 0, %s23
      %s27 = sphi 0, %s24
      %s28 = sphi 0, %s25
      %s44 = sphi 0, %s46
      %s47 = sphi 0, %s44
      %s48 = sphi 0, %s47
      %s64 = sphi 0, %s48
      %s74 = sphi 0, %s76
      %s77 = sphi 0, %s74
      %s78 = sphi 0, %s77
      %s94 = sphi 0, %s78
      %s98 = sphi 0, %s98
      %s100 = sphi 0, %s98
      %s101 = sphi 0, %s100
      %s115 = sphi 0, %s101
      %s119 = sphi 0, %s119
      %s121 = sphi 0, %s119
      %s122 = sphi 0, %s121
      %s136 = sphi 0, %s122
      %s144 = sphi 0, %s146
      %s147 = sphi 0, %s144
      %s148 = sphi 0, %s147
      %s164 = sphi 0, %s148
    $region4: #{tpu_custom_call.1} parent=1 // loop_header_branch
      %16 = sbr.rel (%p14) target = $region8
    $region5: #{tpu_custom_call.1} parent=1 // loop_body
      %s18 = ssub.s32 %s13, 1
      %s19 = ssub.s32 %s13, 2
      %s29 = sadd.s32 1, %s22
      %p30 = scmp.ge.s32.totalorder %s29, 1
      %s31 = scalar_select %p30, 0, %s29
      %s32 = sadd.s32 1, %s21
      %s33 = scalar_select %p30, %s32, %s21
      %p34 = scmp.ge.s32.totalorder %s33, 1
      %s35 = scalar_select %p34, 0, %s33
      %s36 = sadd.s32 1, %s20
      %s37 = scalar_select %p34, %s36, %s20
      %p38 = scmp.ge.s32.totalorder %s37, 2
      %s39 = scalar_select %p38, 0, %s37
      %s40 = ssub.s32 %s20, %s39
      %s41 = ssub.s32 %s22, %s31
      %s42 = sor.u32 %s40, %s41
      %p43 = scmp.eq.s32.totalorder %s42, 0
      %s45 = sadd.s32 %s44, 1
      %s46 = scalar_select %p43, %s44, %s45
      %p49 = pneg %p43
      %p50 = scmp.eq.s32.totalorder %s13, 1
      %p51 = por %p49, %p50
      %p52 = scmp.ne.s32.totalorder %s44, %s47
      %p53 = scmp.eq.s32.totalorder %s13, 0
      %p54 = por %p52, %p53
      %p55 = scmp.ne.s32.totalorder %s44, %s47
      %p56 = scmp.eq.s32.totalorder %s18, 1
      %p57 = por %p55, %p56
      %p58 = scmp.ne.s32.totalorder %s47, %s48
      %p59 = scmp.eq.s32.totalorder %s18, 0
      %p60 = por %p58, %p59
      %p61 = scmp.ne.s32.totalorder %s47, %s48
      %p62 = scmp.eq.s32.totalorder %s19, 1
      %p63 = por %p61, %p62
      %p65 = scmp.ne.s32.totalorder %s48, %s64
      %p66 = scmp.eq.s32.totalorder %s19, 0
      %p67 = por %p65, %p66
      %s68 = ssub.s32 %s20, %s39
      %s69 = ssub.s32 %s21, %s35
      %s70 = sor.u32 %s68, %s69
      %s71 = ssub.s32 %s22, %s31
      %s72 = sor.u32 %s70, %s71
      %p73 = scmp.eq.s32.totalorder %s72, 0
      %s75 = sadd.s32 %s74, 1
      %s76 = scalar_select %p73, %s74, %s75
      %p79 = pneg %p73
      %p80 = scmp.eq.s32.totalorder %s13, 1
      %p81 = por %p79, %p80
      %p82 = scmp.ne.s32.totalorder %s74, %s77
      %p83 = scmp.eq.s32.totalorder %s13, 0
      %p84 = por %p82, %p83
      %p85 = scmp.ne.s32.totalorder %s74, %s77
      %p86 = scmp.eq.s32.totalorder %s18, 1
      %p87 = por %p85, %p86
      %p88 = scmp.ne.s32.totalorder %s77, %s78
      %p89 = scmp.eq.s32.totalorder %s18, 0
      %p90 = por %p88, %p89
      %p91 = scmp.ne.s32.totalorder %s77, %s78
      %p92 = scmp.eq.s32.totalorder %s19, 1
      %p93 = por %p91, %p92
      %p95 = scmp.ne.s32.totalorder %s78, %s94
      %p96 = scmp.eq.s32.totalorder %s19, 0
      %p97 = por %p95, %p96
      %s99 = sadd.s32 %s98, 1
      %p102 = scmp.eq.s32.totalorder %s13, 1
      %p103 = scmp.ne.s32.totalorder %s98, %s100
      %p104 = scmp.eq.s32.totalorder %s13, 0
      %p105 = por %p103, %p104
      %p106 = scmp.ne.s32.totalorder %s98, %s100
      %p107 = scmp.eq.s32.totalorder %s18, 1
      %p108 = por %p106, %p107
      %p109 = scmp.ne.s32.totalorder %s100, %s101
      %p110 = scmp.eq.s32.totalorder %s18, 0
      %p111 = por %p109, %p110
      %p112 = scmp.ne.s32.totalorder %s100, %s101
      %p113 = scmp.eq.s32.totalorder %s19, 1
      %p114 = por %p112, %p113
      %p116 = scmp.ne.s32.totalorder %s101, %s115
      %p117 = scmp.eq.s32.totalorder %s19, 0
      %p118 = por %p116, %p117
      %s120 = sadd.s32 %s119, 1
      %p123 = scmp.eq.s32.totalorder %s13, 1
      %p124 = scmp.ne.s32.totalorder %s119, %s121
      %p125 = scmp.eq.s32.totalorder %s13, 0
      %p126 = por %p124, %p125
      %p127 = scmp.ne.s32.totalorder %s119, %s121
      %p128 = scmp.eq.s32.totalorder %s18, 1
      %p129 = por %p127, %p128
      %p130 = scmp.ne.s32.totalorder %s121, %s122
      %p131 = scmp.eq.s32.totalorder %s18, 0
      %p132 = por %p130, %p131
      %p133 = scmp.ne.s32.totalorder %s121, %s122
      %p134 = scmp.eq.s32.totalorder %s19, 1
      %p135 = por %p133, %p134
      %p137 = scmp.ne.s32.totalorder %s122, %s136
      %p138 = scmp.eq.s32.totalorder %s19, 0
      %p139 = por %p137, %p138
      %s140 = ssub.s32 %s20, %s39
      %s141 = ssub.s32 %s21, %s35
      %s142 = sor.u32 %s140, %s141
      %p143 = scmp.eq.s32.totalorder %s142, 0
      %s145 = sadd.s32 %s144, 1
      %s146 = scalar_select %p143, %s144, %s145
      %p149 = pneg %p143
      %p150 = scmp.eq.s32.totalorder %s13, 1
      %p151 = por %p149, %p150
      %p152 = scmp.ne.s32.totalorder %s144, %s147
      %p153 = scmp.eq.s32.totalorder %s13, 0
      %p154 = por %p152, %p153
      %p155 = scmp.ne.s32.totalorder %s144, %s147
      %p156 = scmp.eq.s32.totalorder %s18, 1
      %p157 = por %p155, %p156
      %p158 = scmp.ne.s32.totalorder %s147, %s148
      %p159 = scmp.eq.s32.totalorder %s18, 0
      %p160 = por %p158, %p159
      %p161 = scmp.ne.s32.totalorder %s147, %s148
      %p162 = scmp.eq.s32.totalorder %s19, 1
      %p163 = por %p161, %p162
      %p165 = scmp.ne.s32.totalorder %s148, %s164
      %p166 = scmp.eq.s32.totalorder %s19, 0
      %p167 = por %p165, %p166
      %p168 = scmp.le.s32.totalorder 1, %s13
      %p169 = scmp.lt.s32.totalorder %s13, 3
      %p170 = pnand %p168, %p169
      %p171 = pneg %p170
      // Predicated region
      $region9: #{tpu_custom_call.1} parent=5 // pred_check
        _
      $region10: #{tpu_custom_call.1} parent=5 // pred_check_branch
        %173 = sbr.rel (%p170) target = $region12
      $region11: #{tpu_custom_call.1} parent=5 // pred_region
        %s174 = ssub.s32 %s13, 1
        // Predicated region
        $region13: #{tpu_custom_call.1} parent=11 // pred_check
          %p175 = pneg %p111
        $region14: #{tpu_custom_call.1} parent=11 // pred_check_branch
          %177 = sbr.rel (%p175) target = $region16
        $region15: #{tpu_custom_call.1} parent=11 // pred_region
          _
        $region16: #{tpu_custom_call.1} parent=11 // pred_fallthru
          _
        // Predicated region
        $region17: #{tpu_custom_call.1} parent=11 // pred_check
          %p178 = pneg %p132
        $region18: #{tpu_custom_call.1} parent=11 // pred_check_branch
          %180 = sbr.rel (%p178) target = $region20
        $region19: #{tpu_custom_call.1} parent=11 // pred_region
          _
        $region20: #{tpu_custom_call.1} parent=11 // pred_fallthru
          _
      $region12: #{tpu_custom_call.1} parent=5 // pred_fallthru
        _
      %p181 = scmp.lt.s32.totalorder %s13, 2
      // Predicated region
      $region21: #{tpu_custom_call.1} parent=5 // pred_check
        %p182 = pneg %p181
      $region22: #{tpu_custom_call.1} parent=5 // pred_check_branch
        %184 = sbr.rel (%p182) target = $region24
      $region23: #{tpu_custom_call.1} parent=5 // pred_region
        // Predicated region
        $region25: #{tpu_custom_call.1} parent=23 // pred_check
          %p185 = pneg %p54
        $region26: #{tpu_custom_call.1} parent=23 // pred_check_branch
          %187 = sbr.rel (%p185) target = $region28
        $region27: #{tpu_custom_call.1} parent=23 // pred_region
          %s188 = smul.u32 16, %s22
          %p189 = scmp.lt.s32.totalorder %s20, 1
          %s190 = scalar_select %p189, %s20, 1
          %p191 = scmp.lt.s32.totalorder %s188, 15
          %s192 = scalar_select %p191, %s188, 15
          %s193 = smul.addr %s190, 16
          %s194 = sadd.s32 %s192, %s193
          %s195 = smul.addr %s194, 4
          %s196 = scalar_lea.vmem %s0, %s195
          %s197 = smul.u32 16, %s22
        $region28: #{tpu_custom_call.1} parent=23 // pred_fallthru
          _
        // Predicated region
        $region29: #{tpu_custom_call.1} parent=23 // pred_check
          %p198 = pneg %p84
        $region30: #{tpu_custom_call.1} parent=23 // pred_check_branch
          %200 = sbr.rel (%p198) target = $region32
        $region31: #{tpu_custom_call.1} parent=23 // pred_region
          %s201 = smul.u32 4, %s21
          %p202 = scmp.lt.s32.totalorder %s20, 1
          %s203 = scalar_select %p202, %s20, 1
          %p204 = scmp.lt.s32.totalorder %s201, 3
          %s205 = scalar_select %p204, %s201, 3
          %p206 = scmp.lt.s32.totalorder %s22, 0
          %s207 = scalar_select %p206, %s22, 0
          %s208 = sadd.s32 %s207, %s205
          %s209 = smul.addr %s203, 4
          %s210 = sadd.s32 %s208, %s209
          %s211 = smul.addr %s210, 8
          %s212 = scalar_lea.vmem %s1, %s211
          %s213 = smul.u32 4, %s21
        $region32: #{tpu_custom_call.1} parent=23 // pred_fallthru
          _
      $region24: #{tpu_custom_call.1} parent=5 // pred_fallthru
        _
      %p214 = scmp.le.s32.totalorder 1, %s13
      %p215 = scmp.lt.s32.totalorder %s13, 3
      %p216 = pnand %p214, %p215
      %p217 = pneg %p216
      // Predicated region
      $region33: #{tpu_custom_call.1} parent=5 // pred_check
        _
      $region34: #{tpu_custom_call.1} parent=5 // pred_check_branch
        %219 = sbr.rel (%p216) target = $region36
      $region35: #{tpu_custom_call.1} parent=5 // pred_region
        %s220 = ssub.s32 %s13, 1
        %s221 = smul.u32 16, %s25
        %p222 = scmp.lt.s32.totalorder %s23, 1
        %s223 = scalar_select %p222, %s23, 1
        %p224 = scmp.lt.s32.totalorder %s221, 15
        %s225 = scalar_select %p224, %s221, 15
        %s226 = smul.addr %s223, 16
        %s227 = sadd.s32 %s225, %s226
        %s228 = smul.addr %s227, 4
        %s229 = scalar_lea.vmem %s0, %s228
        %p230 = pneg %p60
        %p231 = pneg %p57
        %s232 = smul.u32 4, %s24
        %p233 = scmp.lt.s32.totalorder %s23, 1
        %s234 = scalar_select %p233, %s23, 1
        %p235 = scmp.lt.s32.totalorder %s232, 3
        %s236 = scalar_select %p235, %s232, 3
        %p237 = scmp.lt.s32.totalorder %s25, 0
        %s238 = scalar_select %p237, %s25, 0
        %s239 = sadd.s32 %s238, %s236
        %s240 = smul.addr %s234, 4
        %s241 = sadd.s32 %s239, %s240
        %s242 = smul.addr %s241, 8
        %s243 = scalar_lea.vmem %s1, %s242
        %p244 = pneg %p90
        %p245 = pneg %p87
        %p246 = pneg %p111
        %p247 = pneg %p108
        %p248 = pneg %p132
        %p249 = pneg %p129
        %p250 = pneg %p160
        %p251 = pneg %p157
        %s252 = sand.u32 %s147, 1
        %s253 = scalar_lea.sflag [#allocation4], %s252
        %s254 = sand.u32 %s147, 1
        %s255 = smul.addr %s254, 128
        %s256 = scalar_lea.vmem [#allocation3], %s255
        %s257 = smul.u32 16, %s25
        %p258 = scmp.lt.s32.totalorder %s23, 1
        %s259 = scalar_select %p258, %s23, 1
        %p260 = scmp.lt.s32.totalorder %s257, 15
        %s261 = scalar_select %p260, %s257, 15
        %s262 = smul.addr %s259, 16
        %s263 = sadd.s32 %s261, %s262
        %s264 = smul.addr %s263, 4
        %s265 = scalar_lea.vmem %s0, %s264
        %s266 = smul.u32 16, %s25
        %s267 = smul.u32 4, %s24
        %p268 = scmp.lt.s32.totalorder %s23, 1
        %s269 = scalar_select %p268, %s23, 1
        %p270 = scmp.lt.s32.totalorder %s267, 3
        %s271 = scalar_select %p270, %s267, 3
        %p272 = scmp.lt.s32.totalorder %s25, 0
        %s273 = scalar_select %p272, %s25, 0
        %s274 = sadd.s32 %s273, %s271
        %s275 = smul.addr %s269, 4
        %s276 = sadd.s32 %s274, %s275
        %s277 = smul.addr %s276, 8
        %s278 = scalar_lea.vmem %s1, %s277
        %s279 = smul.u32 4, %s24
        %s280 = smul.u32 16, %s24
        %p282 = scmp.eq.s32.totalorder %s25, 0
        // Predicated region
        $region37: #{tpu_custom_call.1} parent=35 // pred_check
          %p283 = pneg %p282
        $region38: #{tpu_custom_call.1} parent=35 // pred_check_branch
          %285 = sbr.rel (%p283) target = $region40
        $region39: #{tpu_custom_call.1} parent=35 // pred_region
          %vm286 = vcmask 138240
          %287 = vst.msk [vmem:[#allocation2] sm:$0xff] %vm286, 0.0
          %288 = vst.msk [vmem:[#allocation2 + $0x8] sm:$0xff] %vm286, 0.0
          %289 = vst.msk [vmem:[#allocation2 + $0x10] sm:$0xff] %vm286, 0.0
          %290 = vst.msk [vmem:[#allocation2 + $0x18] sm:$0xff] %vm286, 0.0
          %291 = vst.msk [vmem:[#allocation2 + $0x20] sm:$0xff] %vm286, 0.0
          %292 = vst.msk [vmem:[#allocation2 + $0x28] sm:$0xff] %vm286, 0.0
          %293 = vst.msk [vmem:[#allocation2 + $0x30] sm:$0xff] %vm286, 0.0
          %294 = vst.msk [vmem:[#allocation2 + $0x38] sm:$0xff] %vm286, 0.0
          %295 = vst.msk [vmem:[#allocation2 + $0x40] sm:$0xff] %vm286, 0.0
          %296 = vst.msk [vmem:[#allocation2 + $0x48] sm:$0xff] %vm286, 0.0
          %297 = vst.msk [vmem:[#allocation2 + $0x50] sm:$0xff] %vm286, 0.0
          %298 = vst.msk [vmem:[#allocation2 + $0x58] sm:$0xff] %vm286, 0.0
          %299 = vst.msk [vmem:[#allocation2 + $0x60] sm:$0xff] %vm286, 0.0
          %300 = vst.msk [vmem:[#allocation2 + $0x68] sm:$0xff] %vm286, 0.0
          %301 = vst.msk [vmem:[#allocation2 + $0x70] sm:$0xff] %vm286, 0.0
          %302 = vst.msk [vmem:[#allocation2 + $0x78] sm:$0xff] %vm286, 0.0
        $region40: #{tpu_custom_call.1} parent=35 // pred_fallthru
          _
        %v303 = vld [vmem:[%s278] sm:$0xff]
        %v304 = vld [vmem:[%s278 + $0x8] sm:$0xff]
        %v305 = vld [vmem:[%s278 + $0x10] sm:$0xff]
        %v306 = vld [vmem:[%s278 + $0x18] sm:$0xff]
        %v307 = vunpack.c.l.s8.bf16 %v303
        %v308 = vunpack.c.h.s8.bf16 %v303
        %v309 = vunpack.c.l.s8.bf16 %v304
        %v310 = vunpack.c.h.s8.bf16 %v304
        %v311 = vunpack.c.l.s8.bf16 %v305
        %v312 = vunpack.c.h.s8.bf16 %v305
        %v313 = vunpack.c.l.s8.bf16 %v306
        %v314 = vunpack.c.h.s8.bf16 %v306
        %v315 = vld [vmem:[%s265] sm:$0xf]
        %v316 = vld [vmem:[%s265 + $0x4] sm:$0xf]
        %v317 = vld [vmem:[%s265 + $0x8] sm:$0xf]
        %v318 = vld [vmem:[%s265 + $0xc] sm:$0xf]
        %v319 = vld [vmem:[%s265 + $0x10] sm:$0xf]
        %v320 = vld [vmem:[%s265 + $0x14] sm:$0xf]
        %v321 = vld [vmem:[%s265 + $0x18] sm:$0xf]
        %v322 = vld [vmem:[%s265 + $0x1c] sm:$0xf]
        %v323 = vld [vmem:[%s265 + $0x20] sm:$0xf]
        %v324 = vld [vmem:[%s265 + $0x24] sm:$0xf]
        %v325 = vld [vmem:[%s265 + $0x28] sm:$0xf]
        %v326 = vld [vmem:[%s265 + $0x2c] sm:$0xf]
        %v327 = vld [vmem:[%s265 + $0x30] sm:$0xf]
        %v328 = vld [vmem:[%s265 + $0x34] sm:$0xf]
        %v329 = vld [vmem:[%s265 + $0x38] sm:$0xf]
        %v330 = vld [vmem:[%s265 + $0x3c] sm:$0xf]
        %v331 = vld [vmem:[#allocation2] sm:$0xff]
        %v332 = vld [vmem:[#allocation2 + $0x8] sm:$0xff]
        %v333 = vld [vmem:[#allocation2 + $0x10] sm:$0xff]
        %v334 = vld [vmem:[#allocation2 + $0x18] sm:$0xff]
        %v335 = vld [vmem:[#allocation2 + $0x20] sm:$0xff]
        %v336 = vld [vmem:[#allocation2 + $0x28] sm:$0xff]
        %v337 = vld [vmem:[#allocation2 + $0x30] sm:$0xff]
        %v338 = vld [vmem:[#allocation2 + $0x38] sm:$0xff]
        %v339 = vld [vmem:[#allocation2 + $0x40] sm:$0xff]
        %v340 = vld [vmem:[#allocation2 + $0x48] sm:$0xff]
        %v341 = vld [vmem:[#allocation2 + $0x50] sm:$0xff]
        %v342 = vld [vmem:[#allocation2 + $0x58] sm:$0xff]
        %v343 = vld [vmem:[#allocation2 + $0x60] sm:$0xff]
        %v344 = vld [vmem:[#allocation2 + $0x68] sm:$0xff]
        %v345 = vld [vmem:[#allocation2 + $0x70] sm:$0xff]
        %v346 = vld [vmem:[#allocation2 + $0x78] sm:$0xff]
        %v363 = vunpack.c.l.b16 %v315
        %v364 = vunpack.c.l.b16 %v316
        %v365 = vunpack.c.l.b16 %v317
        %v366 = vunpack.c.l.b16 %v318
        %v367 = vunpack.c.l.b16 %v319
        %v368 = vunpack.c.l.b16 %v320
        %v369 = vunpack.c.l.b16 %v321
        %v370 = vunpack.c.l.b16 %v322
        %v371 = vunpack.c.l.b16 %v323
        %v372 = vunpack.c.l.b16 %v324
        %v373 = vunpack.c.l.b16 %v325
        %v374 = vunpack.c.l.b16 %v326
        %v375 = vunpack.c.l.b16 %v327
        %v376 = vunpack.c.l.b16 %v328
        %v377 = vunpack.c.l.b16 %v329
        %v378 = vunpack.c.l.b16 %v330
        %v379 = vpack.c.b16 %v364, %v363
        %v380 = vpack.c.b16 %v366, %v365
        %v381 = vpack.c.b16 %v368, %v367
        %v382 = vpack.c.b16 %v370, %v369
        %v383 = vpack.c.b16 %v372, %v371
        %v384 = vpack.c.b16 %v374, %v373
        %v385 = vpack.c.b16 %v376, %v375
        %v386 = vpack.c.b16 %v378, %v377
        %395 = vmatprep.subr.bf16.mxu0 0
        %396 = vmatpush1.bf16.msra.mxu0 %v379
        %397 = vmatprep.subr.bf16.mxu0 0
        %398 = vmatpush1.bf16.msra.mxu0 %v380
        %399 = vmatprep.subr.bf16.mxu0 0
        %400 = vmatpush1.bf16.msra.mxu0 %v381
        %401 = vmatprep.subr.bf16.mxu0 0
        %402 = vmatpush1.bf16.msra.mxu0 %v382
        %403 = vmatprep.subr.bf16.mxu0 0
        %404 = vmatpush1.bf16.msra.mxu0 %v383
        %405 = vmatprep.subr.bf16.mxu0 0
        %406 = vmatpush1.bf16.msra.mxu0 %v384
        %407 = vmatprep.subr.bf16.mxu0 0
        %408 = vmatpush1.bf16.msra.mxu0 %v385
        %409 = vmatprep.subr.bf16.mxu0 0
        %410 = vmatpush1.bf16.msra.mxu0 %v386
        %411 = vmatprep.subr.bf16.mxu0 0
        %412 = vmatpush1.bf16.msra.mxu0 0
        %413 = vmatprep.subr.bf16.mxu0 0
        %414 = vmatpush1.bf16.msra.mxu0 0
        %415 = vmatprep.subr.bf16.mxu0 0
        %416 = vmatpush1.bf16.msra.mxu0 0
        %417 = vmatprep.subr.bf16.mxu0 0
        %418 = vmatpush1.bf16.msra.mxu0 0
        %419 = vmatprep.subr.bf16.mxu0 0
        %420 = vmatpush1.bf16.msra.mxu0 0
        %421 = vmatprep.subr.bf16.mxu0 0
        %422 = vmatpush1.bf16.msra.mxu0 0
        %423 = vmatprep.subr.bf16.mxu0 0
        %424 = vmatpush1.bf16.msra.mxu0 0
        %425 = vmatprep.subr.bf16.mxu0 0
        %426 = vmatpush1.bf16.msra.mxu0 0
        %427 = vmatprep.mubr.bf16.mxu0 0
        %428 = vmatmul.mubr.bf16.gmra.mrb[0].mxu0 %v307
        %v429 = vpop.f32.mrb[0].mxu0
        %v430 = vadd.f32 0.0, %v429
        %v431 = vpop.f32.mrb[0].mxu0
        %v432 = vpop.f32.mrb[0].mxu0
        %v433 = vadd.f32 0.0, %v432
        %v434 = vpop.f32.mrb[0].mxu0
        %435 = vmatprep.mubr.bf16.mxu0 0
        %436 = vmatmul.mubr.bf16.gmra.mrb[0].mxu0 %v308
        %v437 = vpop.f32.mrb[0].mxu0
        %v438 = vadd.f32 0.0, %v437
        %v439 = vpop.f32.mrb[0].mxu0
        %v440 = vpop.f32.mrb[0].mxu0
        %v441 = vadd.f32 0.0, %v440
        %v442 = vpop.f32.mrb[0].mxu0
        %443 = vmatprep.mubr.bf16.mxu0 0
        %444 = vmatmul.mubr.bf16.gmra.mrb[0].mxu0 %v309
        %v445 = vpop.f32.mrb[0].mxu0
        %v446 = vadd.f32 0.0, %v445
        %v447 = vpop.f32.mrb[0].mxu0
        %v448 = vpop.f32.mrb[0].mxu0
        %v449 = vadd.f32 0.0, %v448
        %v450 = vpop.f32.mrb[0].mxu0
        %451 = vmatprep.mubr.bf16.mxu0 0
        %452 = vmatmul.mubr.bf16.gmra.mrb[0].mxu0 %v310
        %v453 = vpop.f32.mrb[0].mxu0
        %v454 = vadd.f32 0.0, %v453
        %v455 = vpop.f32.mrb[0].mxu0
        %v456 = vpop.f32.mrb[0].mxu0
        %v457 = vadd.f32 0.0, %v456
        %v458 = vpop.f32.mrb[0].mxu0
        %459 = vmatprep.mubr.bf16.mxu0 0
        %460 = vmatmul.mubr.bf16.gmra.mrb[0].mxu0 %v311
        %v461 = vpop.f32.mrb[0].mxu0
        %v462 = vadd.f32 0.0, %v461
        %v463 = vpop.f32.mrb[0].mxu0
        %v464 = vpop.f32.mrb[0].mxu0
        %v465 = vadd.f32 0.0, %v464
        %v466 = vpop.f32.mrb[0].mxu0
        %467 = vmatprep.mubr.bf16.mxu0 0
        %468 = vmatmul.mubr.bf16.gmra.mrb[0].mxu0 %v312
        %v469 = vpop.f32.mrb[0].mxu0
        %v470 = vadd.f32 0.0, %v469
        %v471 = vpop.f32.mrb[0].mxu0
        %v472 = vpop.f32.mrb[0].mxu0
        %v473 = vadd.f32 0.0, %v472
        %v474 = vpop.f32.mrb[0].mxu0
        %475 = vmatprep.mubr.bf16.mxu0 0
        %476 = vmatmul.mubr.bf16.gmra.mrb[0].mxu0 %v313
        %v477 = vpop.f32.mrb[0].mxu0
        %v478 = vadd.f32 0.0, %v477
        %v479 = vpop.f32.mrb[0].mxu0
        %v480 = vpop.f32.mrb[0].mxu0
        %v481 = vadd.f32 0.0, %v480
        %v482 = vpop.f32.mrb[0].mxu0
        %483 = vmatprep.mubr.bf16.mxu0 0
        %484 = vmatmul.mubr.bf16.gmra.mrb[0].mxu0 %v314
        %v485 = vpop.f32.mrb[0].mxu0
        %v486 = vadd.f32 0.0, %v485
        %v487 = vpop.f32.mrb[0].mxu0
        %v488 = vpop.f32.mrb[0].mxu0
        %v489 = vadd.f32 0.0, %v488
        %v490 = vpop.f32.mrb[0].mxu0
        %491 = vdwg.mxu0
        %v492 = vadd.f32 %v331, %v430
        %v493 = vadd.f32 %v332, %v433
        %v494 = vadd.f32 %v333, %v438
        %v495 = vadd.f32 %v334, %v441
        %v496 = vadd.f32 %v335, %v446
        %v497 = vadd.f32 %v336, %v449
        %v498 = vadd.f32 %v337, %v454
        %v499 = vadd.f32 %v338, %v457
        %v500 = vadd.f32 %v339, %v462
        %v501 = vadd.f32 %v340, %v465
        %v502 = vadd.f32 %v341, %v470
        %v503 = vadd.f32 %v342, %v473
        %v504 = vadd.f32 %v343, %v478
        %v505 = vadd.f32 %v344, %v481
        %v506 = vadd.f32 %v345, %v486
        %v507 = vadd.f32 %v346, %v489
        %vm508 = vcmask 138240
        %509 = vst.msk [vmem:[#allocation2] sm:$0xff] %vm508, %v492
        %510 = vst.msk [vmem:[#allocation2 + $0x8] sm:$0xff] %vm508, %v493
        %511 = vst.msk [vmem:[#allocation2 + $0x10] sm:$0xff] %vm508, %v494
        %512 = vst.msk [vmem:[#allocation2 + $0x18] sm:$0xff] %vm508, %v495
        %513 = vst.msk [vmem:[#allocation2 + $0x20] sm:$0xff] %vm508, %v496
        %514 = vst.msk [vmem:[#allocation2 + $0x28] sm:$0xff] %vm508, %v497
        %515 = vst.msk [vmem:[#allocation2 + $0x30] sm:$0xff] %vm508, %v498
        %516 = vst.msk [vmem:[#allocation2 + $0x38] sm:$0xff] %vm508, %v499
        %517 = vst.msk [vmem:[#allocation2 + $0x40] sm:$0xff] %vm508, %v500
        %518 = vst.msk [vmem:[#allocation2 + $0x48] sm:$0xff] %vm508, %v501
        %519 = vst.msk [vmem:[#allocation2 + $0x50] sm:$0xff] %vm508, %v502
        %520 = vst.msk [vmem:[#allocation2 + $0x58] sm:$0xff] %vm508, %v503
        %521 = vst.msk [vmem:[#allocation2 + $0x60] sm:$0xff] %vm508, %v504
        %522 = vst.msk [vmem:[#allocation2 + $0x68] sm:$0xff] %vm508, %v505
        %523 = vst.msk [vmem:[#allocation2 + $0x70] sm:$0xff] %vm508, %v506
        %524 = vst.msk [vmem:[#allocation2 + $0x78] sm:$0xff] %vm508, %v507
        // Predicated region
        $region41: #{tpu_custom_call.1} parent=35 // pred_check
          %p525 = pneg %p282
        $region42: #{tpu_custom_call.1} parent=35 // pred_check_branch
          %527 = sbr.rel (%p525) target = $region44
        $region43: #{tpu_custom_call.1} parent=35 // pred_region
          %v528 = vld [vmem:[#allocation2] sm:$0xff]
          %v529 = vld [vmem:[#allocation2 + $0x8] sm:$0xff]
          %v530 = vld [vmem:[#allocation2 + $0x10] sm:$0xff]
          %v531 = vld [vmem:[#allocation2 + $0x18] sm:$0xff]
          %v532 = vld [vmem:[#allocation2 + $0x20] sm:$0xff]
          %v533 = vld [vmem:[#allocation2 + $0x28] sm:$0xff]
          %v534 = vld [vmem:[#allocation2 + $0x30] sm:$0xff]
          %v535 = vld [vmem:[#allocation2 + $0x38] sm:$0xff]
          %v536 = vld [vmem:[#allocation2 + $0x40] sm:$0xff]
          %v537 = vld [vmem:[#allocation2 + $0x48] sm:$0xff]
          %v538 = vld [vmem:[#allocation2 + $0x50] sm:$0xff]
          %v539 = vld [vmem:[#allocation2 + $0x58] sm:$0xff]
          %v540 = vld [vmem:[#allocation2 + $0x60] sm:$0xff]
          %v541 = vld [vmem:[#allocation2 + $0x68] sm:$0xff]
          %v542 = vld [vmem:[#allocation2 + $0x70] sm:$0xff]
          %v543 = vld [vmem:[#allocation2 + $0x78] sm:$0xff]
          %v544 = vrcp.pop %v528
          %v545 = vrcp.pop %v529
          %v546 = vrcp.pop %v530
          %v547 = vrcp.pop %v531
          %v548 = vrcp.pop %v532
          %v549 = vrcp.pop %v533
          %v550 = vrcp.pop %v534
          %v551 = vrcp.pop %v535
          %v552 = vrcp.pop %v536
          %v553 = vrcp.pop %v537
          %v554 = vrcp.pop %v538
          %v555 = vrcp.pop %v539
          %v556 = vrcp.pop %v540
          %v557 = vrcp.pop %v541
          %v558 = vrcp.pop %v542
          %v559 = vrcp.pop %v543
          %561 = vset.pattern.permute.xlu0 0
          %562 = vperm.xlu0 %561, %v544
          %v563 = vpop.permute.xlu0 %562
          %566 = vset.pattern.permute.xlu0 0
          %567 = vperm.xlu0 %566, %v545
          %v568 = vpop.permute.xlu0 %567
          %571 = vset.pattern.permute.xlu0 0
          %572 = vperm.xlu0 %571, %v546
          %v573 = vpop.permute.xlu0 %572
          %576 = vset.pattern.permute.xlu0 0
          %577 = vperm.xlu0 %576, %v547
          %v578 = vpop.permute.xlu0 %577
          %581 = vset.pattern.permute.xlu0 0
          %582 = vperm.xlu0 %581, %v548
          %v583 = vpop.permute.xlu0 %582
          %586 = vset.pattern.permute.xlu0 0
          %587 = vperm.xlu0 %586, %v549
          %v588 = vpop.permute.xlu0 %587
          %591 = vset.pattern.permute.xlu0 0
          %592 = vperm.xlu0 %591, %v550
          %v593 = vpop.permute.xlu0 %592
          %596 = vset.pattern.permute.xlu0 0
          %597 = vperm.xlu0 %596, %v551
          %v598 = vpop.permute.xlu0 %597
          %601 = vset.pattern.permute.xlu0 0
          %602 = vperm.xlu0 %601, %v552
          %v603 = vpop.permute.xlu0 %602
          %606 = vset.pattern.permute.xlu0 0
          %607 = vperm.xlu0 %606, %v553
          %v608 = vpop.permute.xlu0 %607
          %611 = vset.pattern.permute.xlu0 0
          %612 = vperm.xlu0 %611, %v554
          %v613 = vpop.permute.xlu0 %612
          %616 = vset.pattern.permute.xlu0 0
          %617 = vperm.xlu0 %616, %v555
          %v618 = vpop.permute.xlu0 %617
          %621 = vset.pattern.permute.xlu0 0
          %622 = vperm.xlu0 %621, %v556
          %v623 = vpop.permute.xlu0 %622
          %626 = vset.pattern.permute.xlu0 0
          %627 = vperm.xlu0 %626, %v557
          %v628 = vpop.permute.xlu0 %627
          %631 = vset.pattern.permute.xlu0 0
          %632 = vperm.xlu0 %631, %v558
          %v633 = vpop.permute.xlu0 %632
          %636 = vset.pattern.permute.xlu0 0
          %637 = vperm.xlu0 %636, %v559
          %v638 = vpop.permute.xlu0 %637
          %v640 = vmul.f32 %v528, %v563
          %v641 = vmul.f32 %v529, %v568
          %v642 = vmul.f32 %v530, %v573
          %v643 = vmul.f32 %v531, %v578
          %v644 = vmul.f32 %v532, %v583
          %v645 = vmul.f32 %v533, %v588
          %v646 = vmul.f32 %v534, %v593
          %v647 = vmul.f32 %v535, %v598
          %v648 = vmul.f32 %v536, %v603
          %v649 = vmul.f32 %v537, %v608
          %v650 = vmul.f32 %v538, %v613
          %v651 = vmul.f32 %v539, %v618
          %v652 = vmul.f32 %v540, %v623
          %v653 = vmul.f32 %v541, %v628
          %v654 = vmul.f32 %v542, %v633
          %v655 = vmul.f32 %v543, %v638
          %v656 = vld [vmem:[%s2] sm:$0xff]
          %v657 = vld [vmem:[%s2 + $0x8] sm:$0xff]
          %v658 = vld [vmem:[%s2 + $0x10] sm:$0x1]
          %v659 = vld [vmem:[%s3] sm:$0x1]
          %v661 = vlaneseq
          %v662 = vshrl.u32 %v661, 7
          %v663 = vsub.s32 0, %v662
          %v664 = vrot.slane %v659, %v663
          %v667 = vsel %vm508, %v640, 0
          %v670 = vsel %vm508, %v641, 0
          %v673 = vsel %vm508, %v642, 0
          %v676 = vsel %vm508, %v643, 0
          %v679 = vsel %vm508, %v644, 0
          %v682 = vsel %vm508, %v645, 0
          %v685 = vsel %vm508, %v646, 0
          %v688 = vsel %vm508, %v647, 0
          %v691 = vsel %vm508, %v648, 0
          %v694 = vsel %vm508, %v649, 0
          %v697 = vsel %vm508, %v650, 0
          %v700 = vsel %vm508, %v651, 0
          %v703 = vsel %vm508, %v652, 0
          %v706 = vsel %vm508, %v653, 0
          %v709 = vsel %vm508, %v654, 0
          %v712 = vsel %vm508, %v655, 0
          %vm714 = vcmask 1040384
          %v716 = vsel %vm714, %v658, 0
          %718 = vmatprep.subr.mxu0 0.0
          %719 = vmatpush1.msra.mxu0 %v656
          %720 = vmatprep.subr.mxu0 0.0
          %721 = vmatpush1.msra.mxu0 %v657
          %722 = vmatprep.subr.mxu0 0.0
          %723 = vmatpush1.msra.mxu0 %v716
          %724 = vmatprep.subr.mxu0 0.0
          %725 = vmatpush1.msra.mxu0 0.0
          %726 = vmatprep.subr.mxu0 0.0
          %727 = vmatpush1.msra.mxu0 0.0
          %728 = vmatprep.subr.mxu0 0.0
          %729 = vmatpush1.msra.mxu0 0.0
          %730 = vmatprep.subr.mxu0 0.0
          %731 = vmatpush1.msra.mxu0 0.0
          %732 = vmatprep.subr.mxu0 0.0
          %733 = vmatpush1.msra.mxu0 0.0
          %734 = vmatprep.subr.mxu0 0.0
          %735 = vmatpush1.msra.mxu0 0.0
          %736 = vmatprep.subr.mxu0 0.0
          %737 = vmatpush1.msra.mxu0 0.0
          %738 = vmatprep.subr.mxu0 0.0
          %739 = vmatpush1.msra.mxu0 0.0
          %740 = vmatprep.subr.mxu0 0.0
          %741 = vmatpush1.msra.mxu0 0.0
          %742 = vmatprep.subr.mxu0 0.0
          %743 = vmatpush1.msra.mxu0 0.0
          %744 = vmatprep.subr.mxu0 0.0
          %745 = vmatpush1.msra.mxu0 0.0
          %746 = vmatprep.subr.mxu0 0.0
          %747 = vmatpush1.msra.mxu0 0.0
          %748 = vmatprep.subr.mxu0 0.0
          %749 = vmatpush1.msra.mxu0 0.0
          %750 = vmatprep.subr.mxu0 0.0
          %751 = vmatpush1.msra.mxu0 0.0
          %752 = vmatprep.subr.mxu0 0.0
          %753 = vmatpush1.msra.mxu0 0.0
          %754 = vmatprep.subr.mxu0 0.0
          %755 = vmatpush1.msra.mxu0 0.0
          %756 = vmatprep.subr.mxu0 0.0
          %757 = vmatpush1.msra.mxu0 0.0
          %758 = vmatprep.subr.mxu0 0.0
          %759 = vmatpush1.msra.mxu0 0.0
          %760 = vmatprep.subr.mxu0 0.0
          %761 = vmatpush1.msra.mxu0 0.0
          %762 = vmatprep.subr.mxu0 0.0
          %763 = vmatpush1.msra.mxu0 0.0
          %764 = vmatprep.subr.mxu0 0.0
          %765 = vmatpush1.msra.mxu0 0.0
          %766 = vmatprep.subr.mxu0 0.0
          %767 = vmatpush1.msra.mxu0 0.0
          %768 = vmatprep.subr.mxu0 0.0
          %769 = vmatpush1.msra.mxu0 0.0
          %770 = vmatprep.subr.mxu0 0.0
          %771 = vmatpush1.msra.mxu0 0.0
          %772 = vmatprep.subr.mxu0 0.0
          %773 = vmatpush1.msra.mxu0 0.0
          %774 = vmatprep.subr.mxu0 0.0
          %775 = vmatpush1.msra.mxu0 0.0
          %776 = vmatprep.subr.mxu0 0.0
          %777 = vmatpush1.msra.mxu0 0.0
          %778 = vmatprep.subr.mxu0 0.0
          %779 = vmatpush1.msra.mxu0 0.0
          %780 = vmatprep.subr.mxu0 0.0
          %781 = vmatpush1.msra.mxu0 0.0
          %782 = vmatprep.mubr.f32.mxu0 0.0
          %783 = vmatmul.mubr.f32.gmra.mrb[0].mxu0 %v667
          %v784 = vpop.f32.mrb[0].mxu0
          %v785 = vadd.f32 %v664, %v784
          %v786 = vpop.f32.mrb[0].mxu0
          %787 = vmatprep.mubr.f32.mxu0 0.0
          %788 = vmatmul.mubr.f32.gmra.mrb[0].mxu0 %v670
          %v789 = vpop.f32.mrb[0].mxu0
          %v790 = vadd.f32 %v664, %v789
          %v791 = vpop.f32.mrb[0].mxu0
          %792 = vmatprep.mubr.f32.mxu0 0.0
          %793 = vmatmul.mubr.f32.gmra.mrb[0].mxu0 %v673
          %v794 = vpop.f32.mrb[0].mxu0
          %v795 = vadd.f32 %v664, %v794
          %v796 = vpop.f32.mrb[0].mxu0
          %797 = vmatprep.mubr.f32.mxu0 0.0
          %798 = vmatmul.mubr.f32.gmra.mrb[0].mxu0 %v676
          %v799 = vpop.f32.mrb[0].mxu0
          %v800 = vadd.f32 %v664, %v799
          %v801 = vpop.f32.mrb[0].mxu0
          %802 = vmatprep.mubr.f32.mxu0 0.0
          %803 = vmatmul.mubr.f32.gmra.mrb[0].mxu0 %v679
          %v804 = vpop.f32.mrb[0].mxu0
          %v805 = vadd.f32 %v664, %v804
          %v806 = vpop.f32.mrb[0].mxu0
          %807 = vmatprep.mubr.f32.mxu0 0.0
          %808 = vmatmul.mubr.f32.gmra.mrb[0].mxu0 %v682
          %v809 = vpop.f32.mrb[0].mxu0
          %v810 = vadd.f32 %v664, %v809
          %v811 = vpop.f32.mrb[0].mxu0
          %812 = vmatprep.mubr.f32.mxu0 0.0
          %813 = vmatmul.mubr.f32.gmra.mrb[0].mxu0 %v685
          %v814 = vpop.f32.mrb[0].mxu0
          %v815 = vadd.f32 %v664, %v814
          %v816 = vpop.f32.mrb[0].mxu0
          %817 = vmatprep.mubr.f32.mxu0 0.0
          %818 = vmatmul.mubr.f32.gmra.mrb[0].mxu0 %v688
          %v819 = vpop.f32.mrb[0].mxu0
          %v820 = vadd.f32 %v664, %v819
          %v821 = vpop.f32.mrb[0].mxu0
          %822 = vmatprep.mubr.f32.mxu0 0.0
          %823 = vmatmul.mubr.f32.gmra.mrb[0].mxu0 %v691
          %v824 = vpop.f32.mrb[0].mxu0
          %v825 = vadd.f32 %v664, %v824
          %v826 = vpop.f32.mrb[0].mxu0
          %827 = vmatprep.mubr.f32.mxu0 0.0
          %828 = vmatmul.mubr.f32.gmra.mrb[0].mxu0 %v694
          %v829 = vpop.f32.mrb[0].mxu0
          %v830 = vadd.f32 %v664, %v829
          %v831 = vpop.f32.mrb[0].mxu0
          %832 = vmatprep.mubr.f32.mxu0 0.0
          %833 = vmatmul.mubr.f32.gmra.mrb[0].mxu0 %v697
          %v834 = vpop.f32.mrb[0].mxu0
          %v835 = vadd.f32 %v664, %v834
          %v836 = vpop.f32.mrb[0].mxu0
          %837 = vmatprep.mubr.f32.mxu0 0.0
          %838 = vmatmul.mubr.f32.gmra.mrb[0].mxu0 %v700
          %v839 = vpop.f32.mrb[0].mxu0
          %v840 = vadd.f32 %v664, %v839
          %v841 = vpop.f32.mrb[0].mxu0
          %842 = vmatprep.mubr.f32.mxu0 0.0
          %843 = vmatmul.mubr.f32.gmra.mrb[0].mxu0 %v703
          %v844 = vpop.f32.mrb[0].mxu0
          %v845 = vadd.f32 %v664, %v844
          %v846 = vpop.f32.mrb[0].mxu0
          %847 = vmatprep.mubr.f32.mxu0 0.0
          %848 = vmatmul.mubr.f32.gmra.mrb[0].mxu0 %v706
          %v849 = vpop.f32.mrb[0].mxu0
          %v850 = vadd.f32 %v664, %v849
          %v851 = vpop.f32.mrb[0].mxu0
          %852 = vmatprep.mubr.f32.mxu0 0.0
          %853 = vmatmul.mubr.f32.gmra.mrb[0].mxu0 %v709
          %v854 = vpop.f32.mrb[0].mxu0
          %v855 = vadd.f32 %v664, %v854
          %v856 = vpop.f32.mrb[0].mxu0
          %857 = vmatprep.mubr.f32.mxu0 0.0
          %858 = vmatmul.mubr.f32.gmra.mrb[0].mxu0 %v712
          %v859 = vpop.f32.mrb[0].mxu0
          %v860 = vadd.f32 %v664, %v859
          %v861 = vpop.f32.mrb[0].mxu0
          %862 = vdwg.mxu0
          %863 = vst [vmem:[%s256] sm:$0xff] %v785
          %864 = vst [vmem:[%s256 + $0x8] sm:$0xff] %v790
          %865 = vst [vmem:[%s256 + $0x10] sm:$0xff] %v795
          %866 = vst [vmem:[%s256 + $0x18] sm:$0xff] %v800
          %867 = vst [vmem:[%s256 + $0x20] sm:$0xff] %v805
          %868 = vst [vmem:[%s256 + $0x28] sm:$0xff] %v810
          %869 = vst [vmem:[%s256 + $0x30] sm:$0xff] %v815
          %870 = vst [vmem:[%s256 + $0x38] sm:$0xff] %v820
          %871 = vst [vmem:[%s256 + $0x40] sm:$0xff] %v825
          %872 = vst [vmem:[%s256 + $0x48] sm:$0xff] %v830
          %873 = vst [vmem:[%s256 + $0x50] sm:$0xff] %v835
          %874 = vst [vmem:[%s256 + $0x58] sm:$0xff] %v840
          %875 = vst [vmem:[%s256 + $0x60] sm:$0xff] %v845
          %876 = vst [vmem:[%s256 + $0x68] sm:$0xff] %v850
          %877 = vst [vmem:[%s256 + $0x70] sm:$0xff] %v855
          %878 = vst [vmem:[%s256 + $0x78] sm:$0xff] %v860
        $region44: #{tpu_custom_call.1} parent=35 // pred_fallthru
          _
        %s879 = sand.u32 %s147, 1
        %s880 = scalar_lea.sflag [#allocation4], %s879
        %s881 = sand.u32 %s147, 1
        %s882 = smul.addr %s881, 128
        %s883 = scalar_lea.vmem [#allocation3], %s882
        // Predicated region
        $region45: #{tpu_custom_call.1} parent=35 // pred_check
          %p884 = pneg %p157
        $region46: #{tpu_custom_call.1} parent=35 // pred_check_branch
          %886 = sbr.rel (%p884) target = $region48
        $region47: #{tpu_custom_call.1} parent=35 // pred_region
          %s887 = smul.u32 16, %s24
          %s889 = ssub.s32 2048, 2048
          %890 = vsyncadd %s880, %s889
          %s891 = smul.addr %s23, 16
          %s892 = sadd.s32 %s887, %s891
          %s893 = smul.addr %s892, 128
          %s894 = scalar_lea.hbm %s4, %s893
          %s895 = sshll.u32 %s883, 4
          %s896 = int_to_ptr.vmem [resolvable:$true] %s895
          %901 = dma.vmem_to_hbm [thread:$0]  %s896, 2048, %s894, %s880, 128, 128, 8
        $region48: #{tpu_custom_call.1} parent=35 // pred_fallthru
          _
      $region36: #{tpu_custom_call.1} parent=5 // pred_fallthru
        _
      %p902 = scmp.le.s32.totalorder 2, %s13
      // Predicated region
      $region49: #{tpu_custom_call.1} parent=5 // pred_check
        %p903 = pneg %p902
      $region50: #{tpu_custom_call.1} parent=5 // pred_check_branch
        %905 = sbr.rel (%p903) target = $region52
      $region51: #{tpu_custom_call.1} parent=5 // pred_region
        %s906 = ssub.s32 %s13, 2
        // Predicated region
        $region53: #{tpu_custom_call.1} parent=51 // pred_check
          %p907 = pneg %p163
        $region54: #{tpu_custom_call.1} parent=51 // pred_check_branch
          %909 = sbr.rel (%p907) target = $region56
        $region55: #{tpu_custom_call.1} parent=51 // pred_region
          %s910 = sand.u32 %s148, 1
          %s911 = scalar_lea.sflag [#allocation4], %s910
          %s912 = sand.u32 %s148, 1
          %s913 = smul.addr %s912, 128
          %s914 = scalar_lea.vmem [#allocation3], %s913
          %915 = dma.done %s911, 2048
        $region56: #{tpu_custom_call.1} parent=51 // pred_fallthru
          _
      $region52: #{tpu_custom_call.1} parent=5 // pred_fallthru
        _
    $region6: #{tpu_custom_call.1} parent=1 // loop_footer
      %s17 = sadd.s32 1, %s13
    $region7: #{tpu_custom_call.1} parent=1 // loop_footer_branch
      %12 = sbr.rel target = $region3
    $region8: #{tpu_custom_call.1} parent=1 // loop_exit
      _
    %916 = vsyncpa [#allocation4], 1
    %s917 = scalar_lea.sflag [#allocation4], 1
    %918 = vsyncpa %s917, 1

</llo_original>
